<compile_context>
chip_gen: v5e
topology: v5e:2x2
jax: 0.10.0
libtpu: 0.0.40
codegen_flags: <defaults>
</compile_context>

<pallas_src>
import functools

import jax
import jax.numpy as jnp
from jax.experimental import pallas as pl
from jax.experimental.pallas import tpu as pltpu

LANE = 128          # lane width (fast axis)
TR_MAX = 8192       # rows per grid step: 8192*128*4 B = 4 MiB per f32 input tile
NUM_CORES = 2       # v7x has 2 TensorCores/chip; a size-2 "parallel" axis is
                    # simply serial (and cheap) on single-TC v5e/v6e


def _focal_elementwise(x, t, gamma, alpha, cutoff):
    """Reduced focal loss, elementwise, f32.  Plain JAX: used for the <128
    element ragged tail and as the test reference."""
    x = x.astype(jnp.float32)
    t = t.astype(jnp.float32)
    bce = jnp.maximum(x, 0.0) - x * t + jnp.log1p(jnp.exp(-jnp.abs(x)))
    pt = jnp.exp(-bce)
    return (jnp.where(pt < cutoff, 1.0, 0.0) * alpha * bce
            + jnp.where(pt >= cutoff, 1.0, 0.0) * alpha
            * jnp.power((1.0 - pt) / cutoff, gamma) * bce)


def _pow_int_or_general(y, gamma):
    """y ** gamma, specialized to repeated multiplies for small integer gamma
    (avoids the exp(gamma*log(y)) EUP expansion)."""
    g = float(gamma)
    if g.is_integer() and 0.0 <= g <= 8.0:
        gi = int(g)
        if gi == 0:
            return jnp.ones_like(y)
        out = y
        for _ in range(gi - 1):
            out = out * y
        return out
    return jnp.power(y, g)


def _reduced_focal_sum_kernel(x_ref, t_ref, out_ref, acc_ref, *,
                              gamma, alpha, cutoff,
                              tr, bpc, nc, rows_valid, full_blocks):
    """Per-(core, row-block) reduced focal loss, accumulated per core.

    x_ref, t_ref : VMEM (tr, 128) logits / targets tiles (native dtype).
    out_ref      : SMEM (1, 1) f32 per-core partial; written on the core's
                   last grid step.
    acc_ref      : VMEM (acc_rows, 128) f32 per-core running accumulator.
    """
    c = pl.program_id(0)          # core / partition index   ("parallel")
    i = pl.program_id(1)          # row-block index per core ("arbitrary")
    g = c * bpc + i               # global row-block index

    @pl.when(i == 0)
    def _init():
        acc_ref[...] = jnp.zeros_like(acc_ref)

    x = x_ref[...].astype(jnp.float32)
    t = t_ref[...].astype(jnp.float32)

    # binary_cross_entropy_with_logits (reduction='none'), numerically stable:
    #   bce = max(x, 0) - x*t + log1p(exp(-|x|))
    bce = jnp.maximum(x, 0.0) - x * t + jnp.log1p(jnp.exp(-jnp.abs(x)))
    pt = jnp.exp(-bce)

    # (pt < cutoff)*alpha*bce + (pt >= cutoff)*alpha*((1-pt)/cutoff)**gamma*bce
    # with alpha and cutoff**-gamma folded into compile-time constants:
    #   rf = bce * where(pt < cutoff, alpha, (alpha/cutoff**gamma)*(1-pt)**gamma)
    powed = _pow_int_or_general(1.0 - pt, gamma)
    alpha_f = float(alpha)
    alpha_over_cg = float(alpha) / (float(cutoff) ** float(gamma))
    rf = bce * jnp.where(pt < cutoff, alpha_f, alpha_over_cg * powed)

    acc_rows = acc_ref.shape[0]

    def _accumulate(vals):
        if acc_rows == tr:
            acc_ref[...] += vals
        else:
            # vreg-aligned reshape + cross-vreg adds into the (8,128) scratch.
            acc_ref[...] += jnp.sum(
                vals.reshape(tr // acc_rows, acc_rows, LANE), axis=0)

    if full_blocks > nc * bpc - 1:
        # Every reachable block is fully valid: no masking needed (static).
        _accumulate(rf)
    else:
        @pl.when(g < full_blocks)
        def _acc_full():
            _accumulate(rf)

        @pl.when(g >= full_blocks)
        def _acc_partial():
            # Ragged last block or phantom block (clamped index_map): only the
            # first `rows_valid - g*tr` rows (possibly <= 0) are real.
            rows_here = rows_valid - g * tr
            row_iota = jax.lax.broadcasted_iota(jnp.int32, rf.shape, 0)
            _accumulate(jnp.where(row_iota < rows_here, rf, 0.0))

    @pl.when(i == bpc - 1)
    def _finalize():
        out_ref[0, 0] = jnp.sum(acc_ref[...])


def binary_sigmoid_reduced_focal_loss_sum(logits, targets, gamma, alpha, cutoff,
                                          tr_max=TR_MAX):
    """Equivalent to BinarySigmoidReducedFocalLoss(gamma, alpha, cutoff)(logits, targets)."""
    assert logits.shape == targets.shape
    n = int(logits.size)
    if n == 0:
        return jnp.float32(0.0)

    xf = logits.reshape(-1)
    tf = targets.reshape(-1)

    rows = n // LANE           # full 128-lane rows handled by the kernel
    tail = n - rows * LANE     # < 128 leftover elements (plain-JAX sum)

    tail_sum = jnp.float32(0.0)
    if tail:
        tail_sum = jnp.sum(_focal_elementwise(
            xf[rows * LANE:], tf[rows * LANE:], gamma, alpha, cutoff))
    if rows == 0:
        return tail_sum

    # 128-aligned prefix; pure (bitcast) reshape when the size is aligned.
    if tail:
        x2 = xf[:rows * LANE].reshape(rows, LANE)
        t2 = tf[:rows * LANE].reshape(rows, LANE)
    else:
        x2 = xf.reshape(rows, LANE)
        t2 = tf.reshape(rows, LANE)

    # Row tile: multiple of the narrowest dtype's sublane packing (8 for 4-byte,
    # 16 for 2-byte, 32 for 1-byte), capped at tr_max; for tiny inputs use the
    # full row extent.  The ragged last block is masked in-kernel.
    itemsize = min(x2.dtype.itemsize, t2.dtype.itemsize)
    sub = {4: 8, 2: 16, 1: 32}.get(itemsize, 8)
    if rows >= sub:
        tr = min(int(tr_max), rows)
        tr = max(sub, (tr // sub) * sub)
    else:
        tr = rows

    blocks_total = -(-rows // tr)            # ceil-div
    full_blocks = rows // tr                 # blocks with all tr rows valid
    nc = NUM_CORES if blocks_total >= NUM_CORES else 1
    bpc = -(-blocks_total // nc)             # row blocks per core

    acc_rows = 8 if (tr % 8 == 0) else tr    # small (8,128) accumulator when possible

    def block_map(c, i):
        # Clamp so a phantom block (odd block count split across cores) simply
        # re-reads the last real block; its contribution is masked in-kernel.
        return (jnp.minimum(c * bpc + i, blocks_total - 1), 0)

    kernel = functools.partial(
        _reduced_focal_sum_kernel,
        gamma=float(gamma), alpha=float(alpha), cutoff=float(cutoff),
        tr=tr, bpc=bpc, nc=nc, rows_valid=rows, full_blocks=full_blocks)

    # Double-buffered input tiles + slack; raise the scoped-VMEM limit so
    # tr=8192 f32 tiles fit on v5e's 16 MiB default, stay < v7x's 64 MiB.
    tile_bytes = tr * LANE * (x2.dtype.itemsize + t2.dtype.itemsize)
    vmem_limit = int(min(60 * 1024 * 1024,
                         max(32 * 1024 * 1024, 2 * tile_bytes + 4 * 1024 * 1024)))

    out = pl.pallas_call(
        kernel,
        out_shape=jax.ShapeDtypeStruct((nc, 1), jnp.float32),
        grid_spec=pltpu.PrefetchScalarGridSpec(
            num_scalar_prefetch=0,
            grid=(nc, bpc),
            in_specs=[
                pl.BlockSpec((tr, LANE), block_map),
                pl.BlockSpec((tr, LANE), block_map),
            ],
            out_specs=pl.BlockSpec((1, 1), lambda c, i: (c, 0),
                                   memory_space=pltpu.MemorySpace.SMEM),
            scratch_shapes=[pltpu.VMEM((acc_rows, LANE), jnp.float32)],
        ),
        compiler_params=pltpu.CompilerParams(
            dimension_semantics=("parallel", "arbitrary"),
            vmem_limit_bytes=vmem_limit),
    )(x2, t2)

    return jnp.sum(out) + tail_sum


class BinarySigmoidReducedFocalLoss:
    """JAX/Pallas mirror of the PyTorch module (forward only)."""

    def __init__(self, gamma, alpha, cutoff):
        self.gamma = gamma[0] if hasattr(gamma, "__getitem__") else gamma
        self.alpha = alpha[0] if hasattr(alpha, "__getitem__") else alpha
        self.cutoff = cutoff[0] if hasattr(cutoff, "__getitem__") else cutoff

    def __call__(self, logits, targets, **kwargs):
        return binary_sigmoid_reduced_focal_loss_sum(
            logits, targets, self.gamma, self.alpha, self.cutoff)

    def __repr__(self):
        return (self.__class__.__name__ + "(gamma=" + str(self.gamma)
                + ", alpha=" + str(self.alpha) + ", cutoff=" + str(self.cutoff) + ")")


if __name__ == "__main__":
    key = jax.random.PRNGKey(0)
    k1, k2, k3, k4, k5, k6, k7, k8 = jax.random.split(key, 8)

    gamma, alpha, cutoff = 2.0, 0.25, 0.5
    loss_fn = BinarySigmoidReducedFocalLoss(gamma, alpha, cutoff)

    def ref_sum(x, t):
        return jnp.sum(_focal_elementwise(x.reshape(-1), t.reshape(-1),
                                          gamma, alpha, cutoff))

    # 1) 128-aligned NCHW-like case: zero-copy reshape, single full block.
    x1 = jax.random.normal(k1, (2, 4, 16, 16), dtype=jnp.float32)
    t1 = jax.random.bernoulli(k2, 0.5, (2, 4, 16, 16)).astype(jnp.float32)
    o1 = loss_fn(x1, t1)
    jax.block_until_ready(o1)
    r1 = ref_sum(x1, t1)
    assert jnp.allclose(o1, r1, rtol=5e-4, atol=1e-2), (o1, r1)

    # 2) Ragged case: <128-elem tail in plain JAX, partial last block masked
    #    in-kernel, two row blocks split across the 2-core "parallel" axis.
    x2 = jax.random.normal(k3, (3, 5, 7, 11), dtype=jnp.float32)
    t2 = jax.random.bernoulli(k4, 0.5, (3, 5, 7, 11)).astype(jnp.float32)
    o2 = loss_fn(x2, t2)
    jax.block_until_ready(o2)
    r2 = ref_sum(x2, t2)
    assert jnp.allclose(o2, r2, rtol=5e-4, atol=1e-2), (o2, r2)

    # 3) Multi-block-per-core + phantom-block path (tiny tr_max keeps shapes small):
    #    rows=39, tr=8 -> 5 blocks over 2 cores (3 + 2 real + 1 masked phantom).
    x3 = jax.random.normal(k5, (5, 999), dtype=jnp.float32)
    t3 = jax.random.bernoulli(k6, 0.5, (5, 999)).astype(jnp.float32)
    o3 = binary_sigmoid_reduced_focal_loss_sum(x3, t3, gamma, alpha, cutoff, tr_max=8)
    jax.block_until_ready(o3)
    r3 = ref_sum(x3, t3)
    assert jnp.allclose(o3, r3, rtol=5e-4, atol=1e-2), (o3, r3)

    # 4) Narrow-dtype inputs (bf16 logits/targets), cast to f32 in VMEM.
    x4 = jax.random.normal(k7, (2, 4, 16, 16), dtype=jnp.bfloat16)
    t4 = jax.random.bernoulli(k8, 0.5, (2, 4, 16, 16)).astype(jnp.bfloat16)
    o4 = loss_fn(x4, t4)
    jax.block_until_ready(o4)
    r4 = ref_sum(x4, t4)
    assert jnp.allclose(o4, r4, rtol=1e-3, atol=1e-2), (o4, r4)

    print("KERNEL_OK")
</pallas_src>

<mosaic_0001>
module attributes {stable_mosaic.version = 11 : i64} {
  func.func @_reduced_focal_sum_kernel(%arg0: i32, %arg1: i32, %arg2: memref<16x128xf32, #tpu.memory_space<vmem>>, %arg3: memref<16x128xf32, #tpu.memory_space<vmem>>, %arg4: memref<1x1xf32, #tpu.memory_space<smem>>, %arg5: memref<8x128xf32, #tpu.memory_space<vmem>>) attributes {dimension_semantics = [#tpu.dimension_semantics<parallel>, #tpu.dimension_semantics<arbitrary>], iteration_bounds = array<i64: 1, 1>, scalar_prefetch = 0 : i64, scratch_operands = 1 : i64, tpu.core_type = #tpu.core_type<tc>, window_params = [{transform_indices = @transform_0, window_bounds = array<i64: 16, 128>}, {transform_indices = @transform_1, window_bounds = array<i64: 16, 128>}, {transform_indices = @transform_2, window_bounds = array<i64: 1, 1>}]} {
    %c0_i32 = arith.constant 0 : i32
    %0 = arith.cmpi eq, %arg1, %c0_i32 : i32
    %1 = arith.extui %0 : i1 to i32
    %c0_i32_0 = arith.constant 0 : i32
    %2 = arith.cmpi ne, %1, %c0_i32_0 : i32
    scf.if %2 {
      %cst_17 = arith.constant 0.000000e+00 : f32
      %36 = vector.broadcast %cst_17 : f32 to vector<8x128xf32>
      %c0_18 = arith.constant 0 : index
      %c0_19 = arith.constant 0 : index
      %37 = vector.load %arg5[%c0_18, %c0_19] : memref<8x128xf32, #tpu.memory_space<vmem>>, vector<8x128xf32>
      tpu.vector_store %arg5[%c0_18, %c0_19], %36 {strides = array<i32>} : memref<8x128xf32, #tpu.memory_space<vmem>>, vector<8x128xf32>,
    } else {
    }
    %c0 = arith.constant 0 : index
    %c0_1 = arith.constant 0 : index
    %3 = vector.load %arg2[%c0, %c0_1] : memref<16x128xf32, #tpu.memory_space<vmem>>, vector<16x128xf32>
    %c0_2 = arith.constant 0 : index
    %c0_3 = arith.constant 0 : index
    %4 = vector.load %arg3[%c0_2, %c0_3] : memref<16x128xf32, #tpu.memory_space<vmem>>, vector<16x128xf32>
    %cst = arith.constant 0.000000e+00 : f32
    %5 = vector.broadcast %cst : f32 to vector<16x128xf32>
    %6 = arith.maximumf %3, %5 : vector<16x128xf32>
    %7 = arith.mulf %3, %4 : vector<16x128xf32>
    %8 = arith.subf %6, %7 : vector<16x128xf32>
    %9 = math.absf %3 : vector<16x128xf32>
    %cst_4 = arith.constant 0.000000e+00 : f32
    %10 = vector.broadcast %cst_4 : f32 to vector<16x128xf32>
    %11 = arith.subf %10, %9 : vector<16x128xf32>
    %12 = math.exp %11 : vector<16x128xf32>
    %13 = math.log1p %12 : vector<16x128xf32>
    %14 = arith.addf %8, %13 : vector<16x128xf32>
    %cst_5 = arith.constant 0.000000e+00 : f32
    %15 = vector.broadcast %cst_5 : f32 to vector<16x128xf32>
    %16 = arith.subf %15, %14 : vector<16x128xf32>
    %17 = math.exp %16 : vector<16x128xf32>
    %cst_6 = arith.constant 1.000000e+00 : f32
    %18 = vector.broadcast %cst_6 : f32 to vector<16x128xf32>
    %19 = arith.subf %18, %17 : vector<16x128xf32>
    %20 = arith.mulf %19, %19 : vector<16x128xf32>
    %cst_7 = arith.constant 5.000000e-01 : f32
    %21 = vector.broadcast %cst_7 : f32 to vector<16x128xf32>
    %22 = arith.cmpf olt, %17, %21 : vector<16x128xf32>
    %cst_8 = arith.constant 1.000000e+00 : f32
    %23 = vector.broadcast %cst_8 : f32 to vector<16x128xf32>
    %24 = arith.mulf %23, %20 : vector<16x128xf32>
    %cst_9 = arith.constant 2.500000e-01 : f32
    %25 = vector.broadcast %cst_9 : f32 to vector<16x128xf32>
    %26 = arith.select %22, %25, %24 : vector<16x128xi1>, vector<16x128xf32>
    %27 = arith.mulf %14, %26 : vector<16x128xf32>
    %c0_10 = arith.constant 0 : index
    %c0_11 = arith.constant 0 : index
    %28 = vector.load %arg5[%c0_10, %c0_11] : memref<8x128xf32, #tpu.memory_space<vmem>>, vector<8x128xf32>
    %29 = vector.shape_cast %27 : vector<16x128xf32> to vector<2x8x128xf32>
    %cst_12 = arith.constant dense<0.000000e+00> : vector<8x128xf32>
    %30 = vector.multi_reduction <add>, %29, %cst_12 [0] : vector<2x8x128xf32> to vector<8x128xf32>
    %31 = arith.addf %28, %30 : vector<8x128xf32>
    %c0_13 = arith.constant 0 : index
    %c0_14 = arith.constant 0 : index
    %32 = vector.load %arg5[%c0_13, %c0_14] : memref<8x128xf32, #tpu.memory_space<vmem>>, vector<8x128xf32>
    tpu.vector_store %arg5[%c0_13, %c0_14], %31 {strides = array<i32>} : memref<8x128xf32, #tpu.memory_space<vmem>>, vector<8x128xf32>,
    %c0_i32_15 = arith.constant 0 : i32
    %33 = arith.cmpi eq, %arg1, %c0_i32_15 : i32
    %34 = arith.extui %33 : i1 to i32
    %c0_i32_16 = arith.constant 0 : i32
    %35 = arith.cmpi ne, %34, %c0_i32_16 : i32
    scf.if %35 {
      %c0_17 = arith.constant 0 : index
      %c0_18 = arith.constant 0 : index
      %36 = vector.load %arg5[%c0_17, %c0_18] : memref<8x128xf32, #tpu.memory_space<vmem>>, vector<8x128xf32>
      %37 = vector.shape_cast %36 : vector<8x128xf32> to vector<1x8x128xf32>
      %cst_19 = arith.constant dense<0.000000e+00> : vector<1xf32>
      %38 = vector.multi_reduction <add>, %37, %cst_19 [1, 2] : vector<1x8x128xf32> to vector<1xf32>
      %39 = vector.shape_cast %38 : vector<1xf32> to vector<1x1x1xf32>
      %40 = vector.extract %39[0, 0, 0] : f32 from vector<1x1x1xf32>
      %c0_20 = arith.constant 0 : index
      %c0_21 = arith.constant 0 : index
      %41 = memref.load %arg4[%c0_20, %c0_21] : memref<1x1xf32, #tpu.memory_space<smem>>
      memref.store %40, %arg4[%c0_20, %c0_21] : memref<1x1xf32, #tpu.memory_space<smem>>
    } else {
    }
    return
  }
  func.func @transform_0(%arg0: i32, %arg1: i32) -> (i32, i32) {
    %c1_i32 = arith.constant 1 : i32
    %0 = arith.muli %arg0, %c1_i32 : i32
    %1 = arith.addi %0, %arg1 : i32
    %c0_i32 = arith.constant 0 : i32
    %2 = arith.minsi %1, %c0_i32 : i32
    %c0_i32_0 = arith.constant 0 : i32
    %c0_i32_1 = arith.constant 0 : i32
    return %2, %c0_i32_0 : i32, i32
  }
  func.func @transform_1(%arg0: i32, %arg1: i32) -> (i32, i32) {
    %c1_i32 = arith.constant 1 : i32
    %0 = arith.muli %arg0, %c1_i32 : i32
    %1 = arith.addi %0, %arg1 : i32
    %c0_i32 = arith.constant 0 : i32
    %2 = arith.minsi %1, %c0_i32 : i32
    %c0_i32_0 = arith.constant 0 : i32
    %c0_i32_1 = arith.constant 0 : i32
    return %2, %c0_i32_0 : i32, i32
  }
  func.func @transform_2(%arg0: i32, %arg1: i32) -> (i32, i32) {
    %c0_i32 = arith.constant 0 : i32
    %c0_i32_0 = arith.constant 0 : i32
    return %arg0, %c0_i32 : i32, i32
  }
}

</mosaic_0001>

<llo_original>
// kernel: tpu_custom_call.1
$region0: #{tpu_custom_call.1}
  #allocation0 [shape = 'u32[]', space=smem, size = 0x4, offset = 0x4, fixed_abs, tag = 'smem constant byte address 0x4 - core index']
  #allocation1 [shape = 'u32[72,128]{1,0:T(1,128)}', space=vmem, size = 0x9000, scoped, tag = 'internal scratch']
  #allocation2 [shape = 'f32[8,128]{1,0:T(8,128)}', space=vmem, size = 0x1000, scoped, tag = 'scratch operand']
  %s0 = inlined_call_operand.hbm [shape: f32[16,128], index: 0, kind: input, shape index: {}]
  %s1 = inlined_call_operand.hbm [shape: f32[16,128], index: 1, kind: input, shape index: {}]
  %s2 = inlined_call_operand.hbm [shape: f32[1,1], index: 2, kind: output, shape index: {}]
  %s3 = sld [smem:[#allocation0]]
  $region34: #{tpu_custom_call.1} parent=0
    _
  %s5 = ssub.s32 1, %s3
  %s6 = scalar_select 0, %s5, %s3
  $region1: #{tpu_custom_call.1} parent=0
    #allocation3 [shape = 'u8[8192]{0}', space=vmem, size = 0x2000, scoped, tag = 'input window, operand 0, single buffered']
    #allocation4 [shape = 's32[1]{0}', space=sflag, size = 0x4, scoped, tag = 'scoped memory for tpu_custom_call.1']
    #allocation5 [shape = 's32[1]{0}', space=sflag, size = 0x4, scoped, tag = 'scoped memory for tpu_custom_call.1']
    #allocation6 [shape = 'u8[8192]{0}', space=vmem, size = 0x2000, scoped, tag = 'input window, operand 1, single buffered']
    #allocation7 [shape = 's32[1]{0}', space=sflag, size = 0x4, scoped, tag = 'scoped memory for tpu_custom_call.1']
    #allocation8 [shape = 'u8[512]{0}', space=smem, size = 0x200, scoped, tag = 'output window, operand 0, single buffered']
    %7 = vsyncpa [#allocation4], 0
    %8 = vsyncpa [#allocation7], 0
    %9 = vsyncpa [#allocation5], 0
    // Predicated region
    $region2: #{tpu_custom_call.1} parent=1 // pred_check
      _
    $region3: #{tpu_custom_call.1} parent=1 // pred_check_branch
      %11 = sbr.rel (0) target = $region5
    $region4: #{tpu_custom_call.1} parent=1 // pred_region
      %s12 = sadd.s32 0, 0
      %p13 = scmp.lt.s32.totalorder %s12, 0
      %s14 = scalar_select %p13, %s12, 0
      %s15 = smul.u32 2, %s14
      %17 = vsyncadd [#allocation4], 0
      %s18 = smul.addr %s15, 8
      %s19 = scalar_lea.hbm %s0, %s18
      %s20 = sshll.u32 %s19, 4
      %s21 = int_to_ptr.hbm [resolvable:$true] %s20
      %s22 = sshll.u32 [#allocation3], 4
      %s23 = int_to_ptr.vmem [resolvable:$true] %s22
      %28 = dma.hbm_to_vmem [thread:$0]  %s21, 256, %s23, [#allocation4], 128, 128, 8
    $region5: #{tpu_custom_call.1} parent=1 // pred_fallthru
      _
    // Predicated region
    $region6: #{tpu_custom_call.1} parent=1 // pred_check
      _
    $region7: #{tpu_custom_call.1} parent=1 // pred_check_branch
      %30 = sbr.rel (0) target = $region9
    $region8: #{tpu_custom_call.1} parent=1 // pred_region
      %s31 = sadd.s32 0, 0
      %p32 = scmp.lt.s32.totalorder %s31, 0
      %s33 = scalar_select %p32, %s31, 0
      %s34 = smul.u32 2, %s33
      %36 = vsyncadd [#allocation7], 0
      %s37 = smul.addr %s34, 8
      %s38 = scalar_lea.hbm %s1, %s37
      %s39 = sshll.u32 %s38, 4
      %s40 = int_to_ptr.hbm [resolvable:$true] %s39
      %s41 = sshll.u32 [#allocation6], 4
      %s42 = int_to_ptr.vmem [resolvable:$true] %s41
      %47 = dma.hbm_to_vmem [thread:$0]  %s40, 256, %s42, [#allocation7], 128, 128, 8
    $region9: #{tpu_custom_call.1} parent=1 // pred_fallthru
      _
    // Predicated region
    $region10: #{tpu_custom_call.1} parent=1 // pred_check
      _
    $region11: #{tpu_custom_call.1} parent=1 // pred_check_branch
      %49 = sbr.rel (0) target = $region13
    $region12: #{tpu_custom_call.1} parent=1 // pred_region
      %51 = dma.done [#allocation4], 256
    $region13: #{tpu_custom_call.1} parent=1 // pred_fallthru
      _
    // Predicated region
    $region14: #{tpu_custom_call.1} parent=1 // pred_check
      _
    $region15: #{tpu_custom_call.1} parent=1 // pred_check_branch
      %53 = sbr.rel (0) target = $region17
    $region16: #{tpu_custom_call.1} parent=1 // pred_region
      %55 = dma.done [#allocation7], 256
    $region17: #{tpu_custom_call.1} parent=1 // pred_fallthru
      _
    %s56 = sadd.s32 0, 0
    %p57 = scmp.lt.s32.totalorder %s56, 0
    %s58 = scalar_select %p57, %s56, 0
    %s59 = smul.u32 2, %s58
    %s60 = sadd.s32 0, 0
    %p61 = scmp.lt.s32.totalorder %s60, 0
    %s62 = scalar_select %p61, %s60, 0
    %s63 = smul.u32 2, %s62
    %p64 = scmp.eq.s32.totalorder 0, 0
    // Predicated region
    $region18: #{tpu_custom_call.1} parent=1 // pred_check
      %p65 = pneg %p64
    $region19: #{tpu_custom_call.1} parent=1 // pred_check_branch
      %67 = sbr.rel (%p65) target = $region21
    $region20: #{tpu_custom_call.1} parent=1 // pred_region
      %68 = vst [vmem:[#allocation2] sm:$0xff] 0.0
    $region21: #{tpu_custom_call.1} parent=1 // pred_fallthru
      _
    %v69 = vld [vmem:[#allocation3] sm:$0xff]
    %v70 = vld [vmem:[#allocation3 + $0x8] sm:$0xff]
    %v71 = vld [vmem:[#allocation6] sm:$0xff]
    %v72 = vld [vmem:[#allocation6 + $0x8] sm:$0xff]
    %v73 = vmax.f32 %v69, 0.0
    %v74 = vmax.f32 %v70, 0.0
    %v75 = vmul.f32 %v69, %v71
    %v76 = vmul.f32 %v70, %v72
    %v77 = vsub.f32 %v73, %v75
    %v78 = vsub.f32 %v74, %v76
    %v79 = vand.u32 2147483647, %v69
    %v80 = vand.u32 2147483647, %v70
    %v81 = vsub.f32 0.0, %v79
    %v82 = vsub.f32 0.0, %v80
    %v83 = vmul.f32 %v81, 1.442695
    %v84 = vpow.pop %v83
    %v85 = vmul.f32 %v82, 1.442695
    %v86 = vpow.pop %v85
    %v87 = vadd.f32 %v84, 1.0
    %v88 = vlog2.pop %v87
    %v89 = vmul.f32 %v88, 0.6931472
    %v90 = vmul.f32 -0.5, %v84
    %v91 = vadd.f32 %v90, 1.0
    %v92 = vmul.f32 %v91, %v84
    %v93 = vand.u32 2147483647, %v84
    %vm94 = vcmp.lt.f32.partialorder %v93, 0.0004427343
    %v95 = vsel %vm94, %v92, %v89
    %v96 = vadd.f32 %v86, 1.0
    %v97 = vlog2.pop %v96
    %v98 = vmul.f32 %v97, 0.6931472
    %v99 = vmul.f32 -0.5, %v86
    %v100 = vadd.f32 %v99, 1.0
    %v101 = vmul.f32 %v100, %v86
    %v102 = vand.u32 2147483647, %v86
    %vm103 = vcmp.lt.f32.partialorder %v102, 0.0004427343
    %v104 = vsel %vm103, %v101, %v98
    %v105 = vadd.f32 %v77, %v95
    %v106 = vadd.f32 %v78, %v104
    %v107 = vsub.f32 0.0, %v105
    %v108 = vsub.f32 0.0, %v106
    %v109 = vmul.f32 %v107, 1.442695
    %v110 = vpow.pop %v109
    %v111 = vmul.f32 %v108, 1.442695
    %v112 = vpow.pop %v111
    %v113 = vsub.f32 1.0, %v110
    %v114 = vsub.f32 1.0, %v112
    %v115 = vmul.f32 %v113, %v113
    %v116 = vmul.f32 %v114, %v114
    %vm117 = vcmp.lt.f32.partialorder %v110, 0.5
    %vm118 = vcmp.lt.f32.partialorder %v112, 0.5
    %v119 = vsel %vm117, 0.25, %v115
    %v120 = vsel %vm118, 0.25, %v116
    %v121 = vmul.f32 %v105, %v119
    %v122 = vmul.f32 %v106, %v120
    %v123 = vld [vmem:[#allocation2] sm:$0xff]
    %v124 = vadd.f32 %v121, %v122
    %v125 = vadd.f32 %v123, %v124
    %126 = vst [vmem:[#allocation2] sm:$0xff] %v125
    // Predicated region
    $region22: #{tpu_custom_call.1} parent=1 // pred_check
      %p127 = pneg %p64
    $region23: #{tpu_custom_call.1} parent=1 // pred_check_branch
      %129 = sbr.rel (%p127) target = $region25
    $region24: #{tpu_custom_call.1} parent=1 // pred_region
      %v130 = vld [vmem:[#allocation2] sm:$0xff]
      %131 = vadd.xlane.f32.xlu0 %v130
      %v132 = vpop.xlane.xlu0 %131
      %v133 = vrot.slane %v132, 4
      %v134 = vadd.f32 %v132, %v133
      %v135 = vrot.slane %v134, 2
      %v136 = vadd.f32 %v134, %v135
      %v137 = vrot.slane %v136, 1
      %v138 = vadd.f32 %v136, %v137
      %s139 = vtos %v138
      %s140 = scalar_lea.smem [#allocation8], 0
      %141 = sst [smem:[%s140]] %s139
    $region25: #{tpu_custom_call.1} parent=1 // pred_fallthru
      _
    // Predicated region
    $region26: #{tpu_custom_call.1} parent=1 // pred_check
      _
    $region27: #{tpu_custom_call.1} parent=1 // pred_check_branch
      %143 = sbr.rel (0) target = $region29
    $region28: #{tpu_custom_call.1} parent=1 // pred_region
      %145 = vsyncadd [#allocation5], 0
      %s147 = sshll.u32 %s2, 4
      %s148 = int_to_ptr.hbm [resolvable:$true] %s147
      %150 = dma.smem_to_hbm [#allocation8], 16, %s148, [#allocation5]
    $region29: #{tpu_custom_call.1} parent=1 // pred_fallthru
      _
    // Predicated region
    $region30: #{tpu_custom_call.1} parent=1 // pred_check
      _
    $region31: #{tpu_custom_call.1} parent=1 // pred_check_branch
      %152 = sbr.rel (0) target = $region33
    $region32: #{tpu_custom_call.1} parent=1 // pred_region
      %154 = dma.done [#allocation5], 16
    $region33: #{tpu_custom_call.1} parent=1 // pred_fallthru
      _
    %155 = sfence
    %156 = vsyncpa [#allocation4], 1
    %157 = vsyncpa [#allocation7], 1
    %158 = vsyncpa [#allocation5], 1

</llo_original>
